<compile_context>
chip_gen: v7x
topology: tpu7x:2x2x1
jax: 0.10.0
libtpu: 0.0.40
codegen_flags: <defaults>
</compile_context>

<pallas_src>
import functools

import jax
import jax.numpy as jnp
from jax.experimental import pallas as pl
from jax.experimental.pallas import tpu as pltpu

_LANE = 128
_SUBLANE = 8


def _round_up(x, m):
    return (x + m - 1) // m * m


def _actor_kernel(x_ref, w1_ref, b1_ref, w2_ref, b2_ref, w3_ref, b3_ref,
                  w4_ref, b4_ref, out_ref, *, action_lim, negative_slope):
    """Fused 4-layer MLP: 3x (Linear + LeakyReLU) + Linear + tanh * action_lim."""

    def leaky_relu(z):
        # single mul + max on the VPU (cheaper than compare+select)
        return jnp.maximum(z, negative_slope * z)

    # Layer 1: [TB, S] @ [S, 256]   (bf16 operands, f32 accumulation)
    x = x_ref[...].astype(jnp.bfloat16)
    h = jnp.dot(x, w1_ref[...], preferred_element_type=jnp.float32) + b1_ref[...]
    h = leaky_relu(h)

    # Layer 2: [TB, 256] @ [256, 128]
    h = jnp.dot(h.astype(jnp.bfloat16), w2_ref[...],
                preferred_element_type=jnp.float32) + b2_ref[...]
    h = leaky_relu(h)

    # Layer 3: [TB, 128] @ [128, 64]
    h = jnp.dot(h.astype(jnp.bfloat16), w3_ref[...],
                preferred_element_type=jnp.float32) + b3_ref[...]
    h = leaky_relu(h)

    # Layer 4 (lane-padded to 128): [TB, 64] @ [64, 128]
    a = jnp.tanh(jnp.dot(h.astype(jnp.bfloat16), w4_ref[...],
                         preferred_element_type=jnp.float32) + b4_ref[...])
    out_ref[...] = (a * action_lim).astype(out_ref.dtype)


def actor_forward(state, params, action_lim, negative_slope=0.15, tile_b=1024):
    """Run the fused Actor forward pass.

    state:  [batch, state_dim] float32
    params: dict with w1..w4 (bf16, [in, out]) and b1..b4 (f32, [1, out])
    returns: [batch, action_dim] float32
    """
    batch, state_dim = state.shape
    action_dim = params["w4"].shape[1]

    # --- lane-dense output: zero-pad the last layer to a multiple of 128 ---
    out_pad = _round_up(action_dim, _LANE)
    w4 = jnp.pad(params["w4"], ((0, 0), (0, out_pad - action_dim)))
    b4 = jnp.pad(params["b4"], ((0, 0), (0, out_pad - action_dim)))

    # --- batch tiling: pad batch to a sublane multiple, cap the tile size ---
    padded_b = _round_up(batch, _SUBLANE)
    tb = min(_round_up(tile_b, _SUBLANE), padded_b)
    padded_b = _round_up(padded_b, tb)
    x = state
    if padded_b != batch:
        x = jnp.pad(state, ((0, padded_b - batch), (0, 0)))

    grid = (padded_b // tb,)

    kernel = functools.partial(
        _actor_kernel,
        action_lim=float(action_lim),
        negative_slope=float(negative_slope),
    )

    def resident(arr):
        # full-array block, constant block index -> stays resident in VMEM
        return pl.BlockSpec(arr.shape, lambda i: (0, 0))

    out = pl.pallas_call(
        kernel,
        out_shape=jax.ShapeDtypeStruct((padded_b, out_pad), jnp.float32),
        grid=grid,
        in_specs=[
            pl.BlockSpec((tb, state_dim), lambda i: (i, 0)),   # state tile
            resident(params["w1"]), resident(params["b1"]),
            resident(params["w2"]), resident(params["b2"]),
            resident(params["w3"]), resident(params["b3"]),
            resident(w4), resident(b4),
        ],
        out_specs=pl.BlockSpec((tb, out_pad), lambda i: (i, 0)),
        compiler_params=pltpu.CompilerParams(
            dimension_semantics=("parallel",),
        ),
    )(
        x,
        params["w1"], params["b1"],
        params["w2"], params["b2"],
        params["w3"], params["b3"],
        w4, b4,
    )

    return out[:batch, :action_dim]


def init_actor_params(key, state_dim, action_dim):
    """Parameter init mirroring the PyTorch module's shapes.

    Weights: Xavier-uniform (gain=1), stored as [in, out], cast to bf16.
    Biases:  PyTorch Linear default U(-1/sqrt(fan_in), 1/sqrt(fan_in)), f32 [1, out].
    """
    dims = [(state_dim, 256), (256, 128), (128, 64), (64, action_dim)]
    params = {}
    for i, (fan_in, fan_out) in enumerate(dims, start=1):
        key, kw, kb = jax.random.split(key, 3)
        limit_w = jnp.sqrt(6.0 / (fan_in + fan_out))
        w = jax.random.uniform(kw, (fan_in, fan_out), jnp.float32, -limit_w, limit_w)
        params[f"w{i}"] = w.astype(jnp.bfloat16)
        limit_b = 1.0 / jnp.sqrt(fan_in)
        params[f"b{i}"] = jax.random.uniform(
            kb, (1, fan_out), jnp.float32, -limit_b, limit_b
        )
    return params


def actor_forward_ref(state, params, action_lim, negative_slope=0.15):
    """Pure-JAX reference using the same bf16-operand / f32-accumulate recipe."""
    def leaky(z):
        return jnp.maximum(z, negative_slope * z)

    def lin(h, w, b):
        return jnp.dot(h.astype(jnp.bfloat16), w,
                       preferred_element_type=jnp.float32) + b

    h = leaky(lin(state, params["w1"], params["b1"]))
    h = leaky(lin(h, params["w2"], params["b2"]))
    h = leaky(lin(h, params["w3"], params["b3"]))
    return jnp.tanh(lin(h, params["w4"], params["b4"])) * action_lim


if __name__ == "__main__":
    key = jax.random.PRNGKey(0)

    state_dim = 16
    action_dim = 4
    action_lim = 2.0

    params = init_actor_params(key, state_dim, action_dim)

    # Case 1: tiny batch (spec-sized) -- padded up to one sublane inside the wrapper.
    key, kx = jax.random.split(key)
    state_small = jax.random.normal(kx, (2, state_dim), jnp.float32)
    out_small = jax.block_until_ready(actor_forward(state_small, params, action_lim))
    ref_small = actor_forward_ref(state_small, params, action_lim)
    assert out_small.shape == (2, action_dim)
    assert jnp.allclose(out_small, ref_small, atol=5e-3, rtol=5e-3), \
        "mismatch vs reference (small batch)"

    # Case 2: larger, non-aligned batch -- exercises the batch grid + padding path.
    key, kx = jax.random.split(key)
    state_big = jax.random.normal(kx, (300, state_dim), jnp.float32)
    out_big = jax.block_until_ready(
        actor_forward(state_big, params, action_lim, tile_b=128)
    )
    ref_big = actor_forward_ref(state_big, params, action_lim)
    assert out_big.shape == (300, action_dim)
    assert jnp.allclose(out_big, ref_big, atol=5e-3, rtol=5e-3), \
        "mismatch vs reference (batched grid)"

    print("KERNEL_OK")
</pallas_src>

<mosaic_0001>
module attributes {stable_mosaic.version = 11 : i64} {
  func.func @_actor_kernel(%arg0: i32, %arg1: memref<8x16xf32, #tpu.memory_space<vmem>>, %arg2: memref<16x256xbf16, #tpu.memory_space<vmem>>, %arg3: memref<1x256xf32, #tpu.memory_space<vmem>>, %arg4: memref<256x128xbf16, #tpu.memory_space<vmem>>, %arg5: memref<1x128xf32, #tpu.memory_space<vmem>>, %arg6: memref<128x64xbf16, #tpu.memory_space<vmem>>, %arg7: memref<1x64xf32, #tpu.memory_space<vmem>>, %arg8: memref<64x128xbf16, #tpu.memory_space<vmem>>, %arg9: memref<1x128xf32, #tpu.memory_space<vmem>>, %arg10: memref<8x128xf32, #tpu.memory_space<vmem>>) attributes {dimension_semantics = [#tpu.dimension_semantics<parallel>], iteration_bounds = array<i64: 1>, scalar_prefetch = 0 : i64, scratch_operands = 0 : i64, tpu.core_type = #tpu.core_type<tc>, window_params = [{transform_indices = @transform_0, window_bounds = array<i64: 8, 16>}, {pipeline_mode = #tpu.pipeline_mode<synchronous>, transform_indices = @transform_1, window_bounds = array<i64: 16, 256>}, {pipeline_mode = #tpu.pipeline_mode<synchronous>, transform_indices = @transform_2, window_bounds = array<i64: 1, 256>}, {pipeline_mode = #tpu.pipeline_mode<synchronous>, transform_indices = @transform_3, window_bounds = array<i64: 256, 128>}, {pipeline_mode = #tpu.pipeline_mode<synchronous>, transform_indices = @transform_4, window_bounds = array<i64: 1, 128>}, {pipeline_mode = #tpu.pipeline_mode<synchronous>, transform_indices = @transform_5, window_bounds = array<i64: 128, 64>}, {pipeline_mode = #tpu.pipeline_mode<synchronous>, transform_indices = @transform_6, window_bounds = array<i64: 1, 64>}, {pipeline_mode = #tpu.pipeline_mode<synchronous>, transform_indices = @transform_7, window_bounds = array<i64: 64, 128>}, {pipeline_mode = #tpu.pipeline_mode<synchronous>, transform_indices = @transform_8, window_bounds = array<i64: 1, 128>}, {transform_indices = @transform_9, window_bounds = array<i64: 8, 128>}]} {
    %c0 = arith.constant 0 : index
    %c0_0 = arith.constant 0 : index
    %0 = vector.load %arg1[%c0, %c0_0] : memref<8x16xf32, #tpu.memory_space<vmem>>, vector<8x16xf32>
    %1 = arith.truncf %0 : vector<8x16xf32> to vector<8x16xbf16>
    %c0_1 = arith.constant 0 : index
    %c0_2 = arith.constant 0 : index
    %2 = vector.load %arg2[%c0_1, %c0_2] : memref<16x256xbf16, #tpu.memory_space<vmem>>, vector<16x256xbf16>
    %cst = arith.constant dense<0.000000e+00> : vector<8x256xf32>
    %3 = tpu.matmul %1, %2, %cst {dimension_numbers = #tpu.dot_dimension_numbers<[1], [0], [0], [1], [0, 0, 1, 1], [], []>} : vector<8x16xbf16>, vector<16x256xbf16>, vector<8x256xf32> -> vector<8x256xf32>
    %c0_3 = arith.constant 0 : index
    %c0_4 = arith.constant 0 : index
    %4 = vector.load %arg3[%c0_3, %c0_4] : memref<1x256xf32, #tpu.memory_space<vmem>>, vector<1x256xf32>
    %5 = vector.broadcast %4 : vector<1x256xf32> to vector<8x256xf32>
    %6 = arith.addf %3, %5 : vector<8x256xf32>
    %cst_5 = arith.constant 1.500000e-01 : f32
    %7 = vector.broadcast %cst_5 : f32 to vector<8x256xf32>
    %8 = arith.mulf %7, %6 : vector<8x256xf32>
    %9 = arith.maximumf %6, %8 : vector<8x256xf32>
    %10 = arith.truncf %9 : vector<8x256xf32> to vector<8x256xbf16>
    %c0_6 = arith.constant 0 : index
    %c0_7 = arith.constant 0 : index
    %11 = vector.load %arg4[%c0_6, %c0_7] : memref<256x128xbf16, #tpu.memory_space<vmem>>, vector<256x128xbf16>
    %cst_8 = arith.constant dense<0.000000e+00> : vector<8x128xf32>
    %12 = tpu.matmul %10, %11, %cst_8 {dimension_numbers = #tpu.dot_dimension_numbers<[1], [0], [0], [1], [0, 0, 1, 1], [], []>} : vector<8x256xbf16>, vector<256x128xbf16>, vector<8x128xf32> -> vector<8x128xf32>
    %c0_9 = arith.constant 0 : index
    %c0_10 = arith.constant 0 : index
    %13 = vector.load %arg5[%c0_9, %c0_10] : memref<1x128xf32, #tpu.memory_space<vmem>>, vector<1x128xf32>
    %14 = vector.broadcast %13 : vector<1x128xf32> to vector<8x128xf32>
    %15 = arith.addf %12, %14 : vector<8x128xf32>
    %cst_11 = arith.constant 1.500000e-01 : f32
    %16 = vector.broadcast %cst_11 : f32 to vector<8x128xf32>
    %17 = arith.mulf %16, %15 : vector<8x128xf32>
    %18 = arith.maximumf %15, %17 : vector<8x128xf32>
    %19 = arith.truncf %18 : vector<8x128xf32> to vector<8x128xbf16>
    %c0_12 = arith.constant 0 : index
    %c0_13 = arith.constant 0 : index
    %20 = vector.load %arg6[%c0_12, %c0_13] : memref<128x64xbf16, #tpu.memory_space<vmem>>, vector<128x64xbf16>
    %cst_14 = arith.constant dense<0.000000e+00> : vector<8x64xf32>
    %21 = tpu.matmul %19, %20, %cst_14 {dimension_numbers = #tpu.dot_dimension_numbers<[1], [0], [0], [1], [0, 0, 1, 1], [], []>} : vector<8x128xbf16>, vector<128x64xbf16>, vector<8x64xf32> -> vector<8x64xf32>
    %c0_15 = arith.constant 0 : index
    %c0_16 = arith.constant 0 : index
    %22 = vector.load %arg7[%c0_15, %c0_16] : memref<1x64xf32, #tpu.memory_space<vmem>>, vector<1x64xf32>
    %23 = vector.broadcast %22 : vector<1x64xf32> to vector<8x64xf32>
    %24 = arith.addf %21, %23 : vector<8x64xf32>
    %cst_17 = arith.constant 1.500000e-01 : f32
    %25 = vector.broadcast %cst_17 : f32 to vector<8x64xf32>
    %26 = arith.mulf %25, %24 : vector<8x64xf32>
    %27 = arith.maximumf %24, %26 : vector<8x64xf32>
    %28 = arith.truncf %27 : vector<8x64xf32> to vector<8x64xbf16>
    %c0_18 = arith.constant 0 : index
    %c0_19 = arith.constant 0 : index
    %29 = vector.load %arg8[%c0_18, %c0_19] : memref<64x128xbf16, #tpu.memory_space<vmem>>, vector<64x128xbf16>
    %cst_20 = arith.constant dense<0.000000e+00> : vector<8x128xf32>
    %30 = tpu.matmul %28, %29, %cst_20 {dimension_numbers = #tpu.dot_dimension_numbers<[1], [0], [0], [1], [0, 0, 1, 1], [], []>} : vector<8x64xbf16>, vector<64x128xbf16>, vector<8x128xf32> -> vector<8x128xf32>
    %c0_21 = arith.constant 0 : index
    %c0_22 = arith.constant 0 : index
    %31 = vector.load %arg9[%c0_21, %c0_22] : memref<1x128xf32, #tpu.memory_space<vmem>>, vector<1x128xf32>
    %32 = vector.broadcast %31 : vector<1x128xf32> to vector<8x128xf32>
    %33 = arith.addf %30, %32 : vector<8x128xf32>
    %34 = math.tanh %33 : vector<8x128xf32>
    %cst_23 = arith.constant 2.000000e+00 : f32
    %35 = vector.broadcast %cst_23 : f32 to vector<8x128xf32>
    %36 = arith.mulf %34, %35 : vector<8x128xf32>
    %c0_24 = arith.constant 0 : index
    %c0_25 = arith.constant 0 : index
    %37 = vector.load %arg10[%c0_24, %c0_25] : memref<8x128xf32, #tpu.memory_space<vmem>>, vector<8x128xf32>
    tpu.vector_store %arg10[%c0_24, %c0_25], %36 {strides = array<i32>} : memref<8x128xf32, #tpu.memory_space<vmem>>, vector<8x128xf32>,
    return
  }
  func.func @transform_0(%arg0: i32) -> (i32, i32) {
    %c0_i32 = arith.constant 0 : i32
    %c0_i32_0 = arith.constant 0 : i32
    return %arg0, %c0_i32 : i32, i32
  }
  func.func @transform_1(%arg0: i32) -> (i32, i32) {
    %c0_i32 = arith.constant 0 : i32
    %c0_i32_0 = arith.constant 0 : i32
    %c0_i32_1 = arith.constant 0 : i32
    return %c0_i32, %c0_i32_0 : i32, i32
  }
  func.func @transform_2(%arg0: i32) -> (i32, i32) {
    %c0_i32 = arith.constant 0 : i32
    %c0_i32_0 = arith.constant 0 : i32
    %c0_i32_1 = arith.constant 0 : i32
    return %c0_i32, %c0_i32_0 : i32, i32
  }
  func.func @transform_3(%arg0: i32) -> (i32, i32) {
    %c0_i32 = arith.constant 0 : i32
    %c0_i32_0 = arith.constant 0 : i32
    %c0_i32_1 = arith.constant 0 : i32
    return %c0_i32, %c0_i32_0 : i32, i32
  }
  func.func @transform_4(%arg0: i32) -> (i32, i32) {
    %c0_i32 = arith.constant 0 : i32
    %c0_i32_0 = arith.constant 0 : i32
    %c0_i32_1 = arith.constant 0 : i32
    return %c0_i32, %c0_i32_0 : i32, i32
  }
  func.func @transform_5(%arg0: i32) -> (i32, i32) {
    %c0_i32 = arith.constant 0 : i32
    %c0_i32_0 = arith.constant 0 : i32
    %c0_i32_1 = arith.constant 0 : i32
    return %c0_i32, %c0_i32_0 : i32, i32
  }
  func.func @transform_6(%arg0: i32) -> (i32, i32) {
    %c0_i32 = arith.constant 0 : i32
    %c0_i32_0 = arith.constant 0 : i32
    %c0_i32_1 = arith.constant 0 : i32
    return %c0_i32, %c0_i32_0 : i32, i32
  }
  func.func @transform_7(%arg0: i32) -> (i32, i32) {
    %c0_i32 = arith.constant 0 : i32
    %c0_i32_0 = arith.constant 0 : i32
    %c0_i32_1 = arith.constant 0 : i32
    return %c0_i32, %c0_i32_0 : i32, i32
  }
  func.func @transform_8(%arg0: i32) -> (i32, i32) {
    %c0_i32 = arith.constant 0 : i32
    %c0_i32_0 = arith.constant 0 : i32
    %c0_i32_1 = arith.constant 0 : i32
    return %c0_i32, %c0_i32_0 : i32, i32
  }
  func.func @transform_9(%arg0: i32) -> (i32, i32) {
    %c0_i32 = arith.constant 0 : i32
    %c0_i32_0 = arith.constant 0 : i32
    return %arg0, %c0_i32 : i32, i32
  }
}

</mosaic_0001>

<llo_original>
// kernel: tpu_custom_call.1
$region0: #{tpu_custom_call.1}
  #allocation0 [shape = 'u32[]', space=smem, size = 0x4, offset = 0x4, fixed_abs, tag = 'smem constant byte address 0x4 - core index']
  #allocation1 [shape = 'u32[144,128]{1,0:T(1,128)}', space=vmem, size = 0x12000, scoped, tag = 'internal scratch']
  %s0 = inlined_call_operand.vmem [shape: f32[8,16], index: 0, kind: input, shape index: {}]
  %s1 = inlined_call_operand.vmem [shape: bf16[16,256], index: 1, kind: input, shape index: {}]
  %s2 = inlined_call_operand.vmem [shape: f32[1,256], index: 2, kind: input, shape index: {}]
  %s3 = inlined_call_operand.hbm [shape: bf16[256,128], index: 3, kind: input, shape index: {}]
  %s4 = inlined_call_operand.vmem [shape: f32[1,128], index: 4, kind: input, shape index: {}]
  %s5 = inlined_call_operand.vmem [shape: bf16[128,64], index: 5, kind: input, shape index: {}]
  %s6 = inlined_call_operand.vmem [shape: f32[1,64], index: 6, kind: input, shape index: {}]
  %s7 = inlined_call_operand.vmem [shape: bf16[64,128], index: 7, kind: input, shape index: {}]
  %s8 = inlined_call_operand.vmem [shape: f32[1,128], index: 8, kind: input, shape index: {}]
  %s9 = inlined_call_operand.hbm [shape: f32[8,128], index: 9, kind: output, shape index: {}]
  %s10 = sld [smem:[#allocation0]]
  $region50: #{tpu_custom_call.1} parent=0
    _
  %s12 = ssub.s32 1, %s10
  %s13 = scalar_select 0, %s12, %s10
  $region1: #{tpu_custom_call.1} parent=0
    #allocation2 [shape = 'u8[65536]{0}', space=vmem, size = 0x10000, scoped, tag = 'input window, operand 3, single buffered']
    #allocation3 [shape = 's32[1]{0}', space=sflag, size = 0x4, scoped, tag = 'scoped memory for tpu_custom_call.1']
    #allocation4 [shape = 's32[1]{0}', space=sflag, size = 0x4, scoped, tag = 'scoped memory for tpu_custom_call.1']
    #allocation5 [shape = 'u8[4096]{0}', space=vmem, size = 0x1000, scoped, tag = 'output window, operand 0, single buffered']
    %14 = vsyncpa [#allocation3], 0
    %15 = vsyncpa [#allocation4], 0
    // Predicated region
    $region2: #{tpu_custom_call.1} parent=1 // pred_check
      _
    $region3: #{tpu_custom_call.1} parent=1 // pred_check_branch
      %17 = sbr.rel (0) target = $region5
    $region4: #{tpu_custom_call.1} parent=1 // pred_region
      _
    $region5: #{tpu_custom_call.1} parent=1 // pred_fallthru
      _
    // Predicated region
    $region6: #{tpu_custom_call.1} parent=1 // pred_check
      _
    $region7: #{tpu_custom_call.1} parent=1 // pred_check_branch
      %19 = sbr.rel (0) target = $region9
    $region8: #{tpu_custom_call.1} parent=1 // pred_region
      _
    $region9: #{tpu_custom_call.1} parent=1 // pred_fallthru
      _
    // Predicated region
    $region10: #{tpu_custom_call.1} parent=1 // pred_check
      _
    $region11: #{tpu_custom_call.1} parent=1 // pred_check_branch
      %21 = sbr.rel (0) target = $region13
    $region12: #{tpu_custom_call.1} parent=1 // pred_region
      _
    $region13: #{tpu_custom_call.1} parent=1 // pred_fallthru
      _
    // Predicated region
    $region14: #{tpu_custom_call.1} parent=1 // pred_check
      _
    $region15: #{tpu_custom_call.1} parent=1 // pred_check_branch
      %23 = sbr.rel (0) target = $region17
    $region16: #{tpu_custom_call.1} parent=1 // pred_region
      %s25 = ssub.s32 2048, 2048
      %26 = vsyncadd [#allocation3], %s25
      %s27 = sshll.u32 [#allocation2], 4
      %s28 = int_to_ptr.vmem [resolvable:$true] %s27
      %33 = dma.hbm_to_vmem [thread:$0]  %s3, 2048, %s28, [#allocation3], 64, 64, 4
    $region17: #{tpu_custom_call.1} parent=1 // pred_fallthru
      _
    // Predicated region
    $region18: #{tpu_custom_call.1} parent=1 // pred_check
      _
    $region19: #{tpu_custom_call.1} parent=1 // pred_check_branch
      %35 = sbr.rel (0) target = $region21
    $region20: #{tpu_custom_call.1} parent=1 // pred_region
      _
    $region21: #{tpu_custom_call.1} parent=1 // pred_fallthru
      _
    // Predicated region
    $region22: #{tpu_custom_call.1} parent=1 // pred_check
      _
    $region23: #{tpu_custom_call.1} parent=1 // pred_check_branch
      %37 = sbr.rel (0) target = $region25
    $region24: #{tpu_custom_call.1} parent=1 // pred_region
      _
    $region25: #{tpu_custom_call.1} parent=1 // pred_fallthru
      _
    // Predicated region
    $region26: #{tpu_custom_call.1} parent=1 // pred_check
      _
    $region27: #{tpu_custom_call.1} parent=1 // pred_check_branch
      %39 = sbr.rel (0) target = $region29
    $region28: #{tpu_custom_call.1} parent=1 // pred_region
      _
    $region29: #{tpu_custom_call.1} parent=1 // pred_fallthru
      _
    // Predicated region
    $region30: #{tpu_custom_call.1} parent=1 // pred_check
      _
    $region31: #{tpu_custom_call.1} parent=1 // pred_check_branch
      %41 = sbr.rel (0) target = $region33
    $region32: #{tpu_custom_call.1} parent=1 // pred_region
      _
    $region33: #{tpu_custom_call.1} parent=1 // pred_fallthru
      _
    // Predicated region
    $region34: #{tpu_custom_call.1} parent=1 // pred_check
      _
    $region35: #{tpu_custom_call.1} parent=1 // pred_check_branch
      %43 = sbr.rel (0) target = $region37
    $region36: #{tpu_custom_call.1} parent=1 // pred_region
      _
    $region37: #{tpu_custom_call.1} parent=1 // pred_fallthru
      _
    // Predicated region
    $region38: #{tpu_custom_call.1} parent=1 // pred_check
      _
    $region39: #{tpu_custom_call.1} parent=1 // pred_check_branch
      %45 = sbr.rel (0) target = $region41
    $region40: #{tpu_custom_call.1} parent=1 // pred_region
      %46 = dma.done [#allocation3], 2048
    $region41: #{tpu_custom_call.1} parent=1 // pred_fallthru
      _
    %v48 = vld [vmem:[%s0] sm:$0xff]
    %v49 = vpack.c.bf16 %v48, %v48
    %v50 = vld [vmem:[%s1] sm:$0xff]
    %v51 = vld [vmem:[%s1 + $0x8] sm:$0xff]
    %v52 = vld [vmem:[%s2] sm:$0x3]
    %v54 = vlaneseq
    %v55 = vshrl.u32 %v54, 7
    %v56 = vsub.s32 0, %v55
    %v57 = vrot.slane %v52, %v56
    %v58 = vlaneseq
    %v59 = vshrl.u32 %v58, 7
    %v60 = vsub.s32 1, %v59
    %v61 = vrot.slane %v52, %v60
    %v66 = vunpack.c.l.b16 %v50
    %v67 = vunpack.c.h.b16 %v50
    %v68 = vunpack.c.l.b16 %v51
    %v69 = vunpack.c.h.b16 %v51
    %v70 = vpack.c.b16 %v68, %v66
    %v71 = vpack.c.b16 %v69, %v67
    %vm74 = vcmask 130048
    %v76 = vsel %vm74, %v49, 0
    %78 = vmatprep.subr.bf16.mxu0 %v71
    %79 = vmatpush1.bf16.msra.mxu0 %v70
    %80 = vmatprep.subr.bf16.mxu0 0
    %81 = vmatpush1.bf16.msra.mxu0 0
    %82 = vmatprep.subr.bf16.mxu0 0
    %83 = vmatpush1.bf16.msra.mxu0 0
    %84 = vmatprep.subr.bf16.mxu0 0
    %85 = vmatpush1.bf16.msra.mxu0 0
    %86 = vmatprep.subr.bf16.mxu0 0
    %87 = vmatpush1.bf16.msra.mxu0 0
    %88 = vmatprep.subr.bf16.mxu0 0
    %89 = vmatpush1.bf16.msra.mxu0 0
    %90 = vmatprep.subr.bf16.mxu0 0
    %91 = vmatpush1.bf16.msra.mxu0 0
    %92 = vmatprep.subr.bf16.mxu0 0
    %93 = vmatpush1.bf16.msra.mxu0 0
    %94 = vmatprep.subr.bf16.mxu0 0
    %95 = vmatpush1.bf16.msra.mxu0 0
    %96 = vmatprep.subr.bf16.mxu0 0
    %97 = vmatpush1.bf16.msra.mxu0 0
    %98 = vmatprep.subr.bf16.mxu0 0
    %99 = vmatpush1.bf16.msra.mxu0 0
    %100 = vmatprep.subr.bf16.mxu0 0
    %101 = vmatpush1.bf16.msra.mxu0 0
    %102 = vmatprep.subr.bf16.mxu0 0
    %103 = vmatpush1.bf16.msra.mxu0 0
    %104 = vmatprep.subr.bf16.mxu0 0
    %105 = vmatpush1.bf16.msra.mxu0 0
    %106 = vmatprep.subr.bf16.mxu0 0
    %107 = vmatpush1.bf16.msra.mxu0 0
    %108 = vmatprep.subr.bf16.mxu0 0
    %109 = vmatpush1.bf16.msra.mxu0 0
    %110 = vmatprep.mubr.bf16.mxu0 0
    %111 = vmatmul.mubr.bf16.gmra.mrb[0].mxu0 %v76
    %v112 = vpop.f32.mrb[0].mxu0
    %v113 = vadd.f32 %v57, %v112
    %v114 = vpop.f32.mrb[0].mxu0
    %v115 = vadd.f32 %v61, %v114
    %v116 = vpop.f32.mrb[0].mxu0
    %v117 = vpop.f32.mrb[0].mxu0
    %118 = vdwg.mxu0
    %v119 = vmul.f32 %v113, 0.15
    %v120 = vmul.f32 %v115, 0.15
    %v121 = vmax.f32 %v113, %v119
    %v122 = vmax.f32 %v115, %v120
    %v123 = vpack.c.bf16 %v121, %v121
    %v124 = vpack.c.bf16 %v122, %v122
    %v125 = vld [vmem:[#allocation2] sm:$0xf]
    %v126 = vld [vmem:[#allocation2 + $0x4] sm:$0xf]
    %v127 = vld [vmem:[#allocation2 + $0x8] sm:$0xf]
    %v128 = vld [vmem:[#allocation2 + $0xc] sm:$0xf]
    %v129 = vld [vmem:[#allocation2 + $0x10] sm:$0xf]
    %v130 = vld [vmem:[#allocation2 + $0x14] sm:$0xf]
    %v131 = vld [vmem:[#allocation2 + $0x18] sm:$0xf]
    %v132 = vld [vmem:[#allocation2 + $0x1c] sm:$0xf]
    %v133 = vld [vmem:[#allocation2 + $0x20] sm:$0xf]
    %v134 = vld [vmem:[#allocation2 + $0x24] sm:$0xf]
    %v135 = vld [vmem:[#allocation2 + $0x28] sm:$0xf]
    %v136 = vld [vmem:[#allocation2 + $0x2c] sm:$0xf]
    %v137 = vld [vmem:[#allocation2 + $0x30] sm:$0xf]
    %v138 = vld [vmem:[#allocation2 + $0x34] sm:$0xf]
    %v139 = vld [vmem:[#allocation2 + $0x38] sm:$0xf]
    %v140 = vld [vmem:[#allocation2 + $0x3c] sm:$0xf]
    %v141 = vld [vmem:[#allocation2 + $0x40] sm:$0xf]
    %v142 = vld [vmem:[#allocation2 + $0x44] sm:$0xf]
    %v143 = vld [vmem:[#allocation2 + $0x48] sm:$0xf]
    %v144 = vld [vmem:[#allocation2 + $0x4c] sm:$0xf]
    %v145 = vld [vmem:[#allocation2 + $0x50] sm:$0xf]
    %v146 = vld [vmem:[#allocation2 + $0x54] sm:$0xf]
    %v147 = vld [vmem:[#allocation2 + $0x58] sm:$0xf]
    %v148 = vld [vmem:[#allocation2 + $0x5c] sm:$0xf]
    %v149 = vld [vmem:[#allocation2 + $0x60] sm:$0xf]
    %v150 = vld [vmem:[#allocation2 + $0x64] sm:$0xf]
    %v151 = vld [vmem:[#allocation2 + $0x68] sm:$0xf]
    %v152 = vld [vmem:[#allocation2 + $0x6c] sm:$0xf]
    %v153 = vld [vmem:[#allocation2 + $0x70] sm:$0xf]
    %v154 = vld [vmem:[#allocation2 + $0x74] sm:$0xf]
    %v155 = vld [vmem:[#allocation2 + $0x78] sm:$0xf]
    %v156 = vld [vmem:[#allocation2 + $0x7c] sm:$0xf]
    %v157 = vld [vmem:[%s4] sm:$0x1]
    %v159 = vlaneseq
    %v160 = vshrl.u32 %v159, 7
    %v161 = vsub.s32 0, %v160
    %v162 = vrot.slane %v157, %v161
    %v196 = vunpack.c.l.b16 %v125
    %v197 = vunpack.c.l.b16 %v126
    %v198 = vunpack.c.l.b16 %v127
    %v199 = vunpack.c.l.b16 %v128
    %v200 = vunpack.c.l.b16 %v129
    %v201 = vunpack.c.l.b16 %v130
    %v202 = vunpack.c.l.b16 %v131
    %v203 = vunpack.c.l.b16 %v132
    %v204 = vunpack.c.l.b16 %v133
    %v205 = vunpack.c.l.b16 %v134
    %v206 = vunpack.c.l.b16 %v135
    %v207 = vunpack.c.l.b16 %v136
    %v208 = vunpack.c.l.b16 %v137
    %v209 = vunpack.c.l.b16 %v138
    %v210 = vunpack.c.l.b16 %v139
    %v211 = vunpack.c.l.b16 %v140
    %v212 = vunpack.c.l.b16 %v141
    %v213 = vunpack.c.l.b16 %v142
    %v214 = vunpack.c.l.b16 %v143
    %v215 = vunpack.c.l.b16 %v144
    %v216 = vunpack.c.l.b16 %v145
    %v217 = vunpack.c.l.b16 %v146
    %v218 = vunpack.c.l.b16 %v147
    %v219 = vunpack.c.l.b16 %v148
    %v220 = vunpack.c.l.b16 %v149
    %v221 = vunpack.c.l.b16 %v150
    %v222 = vunpack.c.l.b16 %v151
    %v223 = vunpack.c.l.b16 %v152
    %v224 = vunpack.c.l.b16 %v153
    %v225 = vunpack.c.l.b16 %v154
    %v226 = vunpack.c.l.b16 %v155
    %v227 = vunpack.c.l.b16 %v156
    %v228 = vpack.c.b16 %v197, %v196
    %v229 = vpack.c.b16 %v199, %v198
    %v230 = vpack.c.b16 %v201, %v200
    %v231 = vpack.c.b16 %v203, %v202
    %v232 = vpack.c.b16 %v205, %v204
    %v233 = vpack.c.b16 %v207, %v206
    %v234 = vpack.c.b16 %v209, %v208
    %v235 = vpack.c.b16 %v211, %v210
    %v236 = vpack.c.b16 %v213, %v212
    %v237 = vpack.c.b16 %v215, %v214
    %v238 = vpack.c.b16 %v217, %v216
    %v239 = vpack.c.b16 %v219, %v218
    %v240 = vpack.c.b16 %v221, %v220
    %v241 = vpack.c.b16 %v223, %v222
    %v242 = vpack.c.b16 %v225, %v224
    %v243 = vpack.c.b16 %v227, %v226
    %260 = vmatprep.subr.bf16.mxu0 0
    %261 = vmatpush1.bf16.msra.mxu0 %v228
    %262 = vmatprep.subr.bf16.mxu0 0
    %263 = vmatpush1.bf16.msra.mxu0 %v229
    %264 = vmatprep.subr.bf16.mxu0 0
    %265 = vmatpush1.bf16.msra.mxu0 %v230
    %266 = vmatprep.subr.bf16.mxu0 0
    %267 = vmatpush1.bf16.msra.mxu0 %v231
    %268 = vmatprep.subr.bf16.mxu0 0
    %269 = vmatpush1.bf16.msra.mxu0 %v232
    %270 = vmatprep.subr.bf16.mxu0 0
    %271 = vmatpush1.bf16.msra.mxu0 %v233
    %272 = vmatprep.subr.bf16.mxu0 0
    %273 = vmatpush1.bf16.msra.mxu0 %v234
    %274 = vmatprep.subr.bf16.mxu0 0
    %275 = vmatpush1.bf16.msra.mxu0 %v235
    %276 = vmatprep.subr.bf16.mxu0 0
    %277 = vmatpush1.bf16.msra.mxu0 %v236
    %278 = vmatprep.subr.bf16.mxu0 0
    %279 = vmatpush1.bf16.msra.mxu0 %v237
    %280 = vmatprep.subr.bf16.mxu0 0
    %281 = vmatpush1.bf16.msra.mxu0 %v238
    %282 = vmatprep.subr.bf16.mxu0 0
    %283 = vmatpush1.bf16.msra.mxu0 %v239
    %284 = vmatprep.subr.bf16.mxu0 0
    %285 = vmatpush1.bf16.msra.mxu0 %v240
    %286 = vmatprep.subr.bf16.mxu0 0
    %287 = vmatpush1.bf16.msra.mxu0 %v241
    %288 = vmatprep.subr.bf16.mxu0 0
    %289 = vmatpush1.bf16.msra.mxu0 %v242
    %290 = vmatprep.subr.bf16.mxu0 0
    %291 = vmatpush1.bf16.msra.mxu0 %v243
    %292 = vmatprep.mubr.bf16.mxu0 %v124
    %293 = vmatmul.mubr.bf16.gmra.mrb[0].mxu0 %v123
    %v294 = vpop.f32.mrb[0].mxu0
    %v295 = vadd.f32 %v162, %v294
    %v296 = vpop.f32.mrb[0].mxu0
    %v297 = vpop.f32.mrb[0].mxu0
    %v298 = vpop.f32.mrb[0].mxu0
    %299 = vdwg.mxu0
    %v300 = vmul.f32 %v295, 0.15
    %v301 = vmax.f32 %v295, %v300
    %v302 = vpack.c.bf16 %v301, %v301
    %v303 = vld [vmem:[%s5] sm:$0xf]
    %v304 = vld [vmem:[%s5 + $0x4] sm:$0xf]
    %v305 = vld [vmem:[%s5 + $0x8] sm:$0xf]
    %v306 = vld [vmem:[%s5 + $0xc] sm:$0xf]
    %v307 = vld [vmem:[%s5 + $0x10] sm:$0xf]
    %v308 = vld [vmem:[%s5 + $0x14] sm:$0xf]
    %v309 = vld [vmem:[%s5 + $0x18] sm:$0xf]
    %v310 = vld [vmem:[%s5 + $0x1c] sm:$0xf]
    %v311 = vld [vmem:[%s5 + $0x20] sm:$0xf]
    %v312 = vld [vmem:[%s5 + $0x24] sm:$0xf]
    %v313 = vld [vmem:[%s5 + $0x28] sm:$0xf]
    %v314 = vld [vmem:[%s5 + $0x2c] sm:$0xf]
    %v315 = vld [vmem:[%s5 + $0x30] sm:$0xf]
    %v316 = vld [vmem:[%s5 + $0x34] sm:$0xf]
    %v317 = vld [vmem:[%s5 + $0x38] sm:$0xf]
    %v318 = vld [vmem:[%s5 + $0x3c] sm:$0xf]
    %v319 = vld [vmem:[%s6] sm:$0x1]
    %v321 = vlaneseq
    %v322 = vshrl.u32 %v321, 7
    %v323 = vsub.s32 0, %v322
    %v324 = vrot.slane %v319, %v323
    %v342 = vunpack.c.l.b16 %v303
    %v343 = vunpack.c.l.b16 %v304
    %v344 = vunpack.c.l.b16 %v305
    %v345 = vunpack.c.l.b16 %v306
    %v346 = vunpack.c.l.b16 %v307
    %v347 = vunpack.c.l.b16 %v308
    %v348 = vunpack.c.l.b16 %v309
    %v349 = vunpack.c.l.b16 %v310
    %v350 = vunpack.c.l.b16 %v311
    %v351 = vunpack.c.l.b16 %v312
    %v352 = vunpack.c.l.b16 %v313
    %v353 = vunpack.c.l.b16 %v314
    %v354 = vunpack.c.l.b16 %v315
    %v355 = vunpack.c.l.b16 %v316
    %v356 = vunpack.c.l.b16 %v317
    %v357 = vunpack.c.l.b16 %v318
    %v358 = vpack.c.b16 %v343, %v342
    %v359 = vpack.c.b16 %v345, %v344
    %v360 = vpack.c.b16 %v347, %v346
    %v361 = vpack.c.b16 %v349, %v348
    %v362 = vpack.c.b16 %v351, %v350
    %v363 = vpack.c.b16 %v353, %v352
    %v364 = vpack.c.b16 %v355, %v354
    %v365 = vpack.c.b16 %v357, %v356
    %374 = vmatprep.subr.bf16.mxu0 0
    %375 = vmatpush1.bf16.msra.mxu0 %v358
    %376 = vmatprep.subr.bf16.mxu0 0
    %377 = vmatpush1.bf16.msra.mxu0 %v359
    %378 = vmatprep.subr.bf16.mxu0 0
    %379 = vmatpush1.bf16.msra.mxu0 %v360
    %380 = vmatprep.subr.bf16.mxu0 0
    %381 = vmatpush1.bf16.msra.mxu0 %v361
    %382 = vmatprep.subr.bf16.mxu0 0
    %383 = vmatpush1.bf16.msra.mxu0 %v362
    %384 = vmatprep.subr.bf16.mxu0 0
    %385 = vmatpush1.bf16.msra.mxu0 %v363
    %386 = vmatprep.subr.bf16.mxu0 0
    %387 = vmatpush1.bf16.msra.mxu0 %v364
    %388 = vmatprep.subr.bf16.mxu0 0
    %389 = vmatpush1.bf16.msra.mxu0 %v365
    %390 = vmatprep.subr.bf16.mxu0 0
    %391 = vmatpush1.bf16.msra.mxu0 0
    %392 = vmatprep.subr.bf16.mxu0 0
    %393 = vmatpush1.bf16.msra.mxu0 0
    %394 = vmatprep.subr.bf16.mxu0 0
    %395 = vmatpush1.bf16.msra.mxu0 0
    %396 = vmatprep.subr.bf16.mxu0 0
    %397 = vmatpush1.bf16.msra.mxu0 0
    %398 = vmatprep.subr.bf16.mxu0 0
    %399 = vmatpush1.bf16.msra.mxu0 0
    %400 = vmatprep.subr.bf16.mxu0 0
    %401 = vmatpush1.bf16.msra.mxu0 0
    %402 = vmatprep.subr.bf16.mxu0 0
    %403 = vmatpush1.bf16.msra.mxu0 0
    %404 = vmatprep.subr.bf16.mxu0 0
    %405 = vmatpush1.bf16.msra.mxu0 0
    %406 = vmatprep.mubr.bf16.mxu0 0
    %407 = vmatmul.mubr.bf16.gmra.mrb[0].mxu0 %v302
    %v408 = vpop.f32.mrb[0].mxu0
    %v409 = vadd.f32 %v324, %v408
    %v410 = vpop.f32.mrb[0].mxu0
    %v411 = vpop.f32.mrb[0].mxu0
    %v412 = vpop.f32.mrb[0].mxu0
    %413 = vdwg.mxu0
    %v414 = vmul.f32 %v409, 0.15
    %v415 = vmax.f32 %v409, %v414
    %v416 = vpack.c.bf16 %v415, %v415
    %v417 = vld [vmem:[%s7] sm:$0xf]
    %v418 = vld [vmem:[%s7 + $0x4] sm:$0xf]
    %v419 = vld [vmem:[%s7 + $0x8] sm:$0xf]
    %v420 = vld [vmem:[%s7 + $0xc] sm:$0xf]
    %v421 = vld [vmem:[%s7 + $0x10] sm:$0xf]
    %v422 = vld [vmem:[%s7 + $0x14] sm:$0xf]
    %v423 = vld [vmem:[%s7 + $0x18] sm:$0xf]
    %v424 = vld [vmem:[%s7 + $0x1c] sm:$0xf]
    %v425 = vld [vmem:[%s8] sm:$0x1]
    %v427 = vlaneseq
    %v428 = vshrl.u32 %v427, 7
    %v429 = vsub.s32 0, %v428
    %v430 = vrot.slane %v425, %v429
    %v440 = vunpack.c.l.b16 %v417
    %v441 = vunpack.c.l.b16 %v418
    %v442 = vunpack.c.l.b16 %v419
    %v443 = vunpack.c.l.b16 %v420
    %v444 = vunpack.c.l.b16 %v421
    %v445 = vunpack.c.l.b16 %v422
    %v446 = vunpack.c.l.b16 %v423
    %v447 = vunpack.c.l.b16 %v424
    %v448 = vpack.c.b16 %v441, %v440
    %v449 = vpack.c.b16 %v443, %v442
    %v450 = vpack.c.b16 %v445, %v444
    %v451 = vpack.c.b16 %v447, %v446
    %vm456 = vcmask 523264
    %v458 = vsel %vm456, %v416, 0
    %460 = vmatprep.subr.bf16.mxu0 0
    %461 = vmatpush1.bf16.msra.mxu0 %v448
    %462 = vmatprep.subr.bf16.mxu0 0
    %463 = vmatpush1.bf16.msra.mxu0 %v449
    %464 = vmatprep.subr.bf16.mxu0 0
    %465 = vmatpush1.bf16.msra.mxu0 %v450
    %466 = vmatprep.subr.bf16.mxu0 0
    %467 = vmatpush1.bf16.msra.mxu0 %v451
    %468 = vmatprep.subr.bf16.mxu0 0
    %469 = vmatpush1.bf16.msra.mxu0 0
    %470 = vmatprep.subr.bf16.mxu0 0
    %471 = vmatpush1.bf16.msra.mxu0 0
    %472 = vmatprep.subr.bf16.mxu0 0
    %473 = vmatpush1.bf16.msra.mxu0 0
    %474 = vmatprep.subr.bf16.mxu0 0
    %475 = vmatpush1.bf16.msra.mxu0 0
    %476 = vmatprep.subr.bf16.mxu0 0
    %477 = vmatpush1.bf16.msra.mxu0 0
    %478 = vmatprep.subr.bf16.mxu0 0
    %479 = vmatpush1.bf16.msra.mxu0 0
    %480 = vmatprep.subr.bf16.mxu0 0
    %481 = vmatpush1.bf16.msra.mxu0 0
    %482 = vmatprep.subr.bf16.mxu0 0
    %483 = vmatpush1.bf16.msra.mxu0 0
    %484 = vmatprep.subr.bf16.mxu0 0
    %485 = vmatpush1.bf16.msra.mxu0 0
    %486 = vmatprep.subr.bf16.mxu0 0
    %487 = vmatpush1.bf16.msra.mxu0 0
    %488 = vmatprep.subr.bf16.mxu0 0
    %489 = vmatpush1.bf16.msra.mxu0 0
    %490 = vmatprep.subr.bf16.mxu0 0
    %491 = vmatpush1.bf16.msra.mxu0 0
    %492 = vmatprep.mubr.bf16.mxu0 0
    %493 = vmatmul.mubr.bf16.gmra.mrb[0].mxu0 %v458
    %v494 = vpop.f32.mrb[0].mxu0
    %v495 = vadd.f32 %v430, %v494
    %v496 = vpop.f32.mrb[0].mxu0
    %v497 = vpop.f32.mrb[0].mxu0
    %v498 = vpop.f32.mrb[0].mxu0
    %499 = vdwg.mxu0
    %v500 = vtanh.pop %v495
    %v501 = vmul.f32 %v500, 2.0
    %502 = vst [vmem:[#allocation5] sm:$0xff] %v501
    // Predicated region
    $region42: #{tpu_custom_call.1} parent=1 // pred_check
      _
    $region43: #{tpu_custom_call.1} parent=1 // pred_check_branch
      %504 = sbr.rel (0) target = $region45
    $region44: #{tpu_custom_call.1} parent=1 // pred_region
      %s506 = ssub.s32 128, 128
      %507 = vsyncadd [#allocation4], %s506
      %s509 = sshll.u32 [#allocation5], 4
      %s510 = int_to_ptr.vmem [resolvable:$true] %s509
      %512 = dma.vmem_to_hbm [thread:$0]  %s510, 128, %s9, [#allocation4]
    $region45: #{tpu_custom_call.1} parent=1 // pred_fallthru
      _
    // Predicated region
    $region46: #{tpu_custom_call.1} parent=1 // pred_check
      _
    $region47: #{tpu_custom_call.1} parent=1 // pred_check_branch
      %514 = sbr.rel (0) target = $region49
    $region48: #{tpu_custom_call.1} parent=1 // pred_region
      %515 = dma.done [#allocation4], 128
    $region49: #{tpu_custom_call.1} parent=1 // pred_fallthru
      _
    %516 = vsyncpa [#allocation3], 1
    %517 = vsyncpa [#allocation4], 1

</llo_original>
